<compile_context>
chip_gen: v5e
topology: v5e:2x2
jax: 0.10.0
libtpu: 0.0.40
codegen_flags: <defaults>
</compile_context>

<pallas_src>
import math

import jax
import jax.numpy as jnp
from jax.experimental import pallas as pl
from jax.experimental.pallas import tpu as pltpu


_CHUNK_ROWS = 512  # rows per in-kernel reduction / apply chunk (caps f32 temporaries)


# ----------------------------------------------------------------------------- kernels

def _make_fused_kernel(num_groups, P, L, chunk):
    """Single-pass kernel: whole (P, L) image per grid step; chunked reduce + apply."""
    n_full = P // chunk
    rem = P - n_full * chunk

    def body(x_ref, gamma_ref, beta_ref, o_ref, combine_ref):
        # ---------- reduction: chunked f32 sum of squares -> (1, L) per-lane sums ----
        def sq_sum(start, size):
            xf = x_ref[pl.ds(start, size), :].astype(jnp.float32)
            return jnp.sum(xf * xf, axis=0, keepdims=True)

        acc = jnp.zeros((1, L), jnp.float32)
        if n_full > 0:
            acc = jax.lax.fori_loop(
                0, n_full,
                lambda i, a: a + sq_sum(pl.multiple_of(i * chunk, chunk), chunk),
                acc)
        if rem > 0:
            acc = acc + sq_sum(n_full * chunk, rem)

        if combine_ref is not None:
            # Fold the G interleaved per-lane partial sums into lane-tiled per-channel
            # sums with one tiny MXU matmul against a 0/1 matrix (exact f32 adds).
            acc = jnp.dot(acc, combine_ref[...], preferred_element_type=jnp.float32)

        gx = jnp.sqrt(acc)                                      # ||x||_2 per channel, lane-tiled
        # mean over lanes == mean over channels (each channel appears num_groups times)
        nx = gx / (jnp.mean(gx, axis=-1, keepdims=True) + 1e-6)
        coeff = gamma_ref[...] * nx + 1.0                       # (1, L) f32
        beta = beta_ref[...]                                    # (1, L) f32

        # ---------- apply: chunked, f32 math, cast only on the store ----------------
        def apply_chunk(start, size):
            xf = x_ref[pl.ds(start, size), :].astype(jnp.float32)
            o_ref[pl.ds(start, size), :] = (xf * coeff + beta).astype(o_ref.dtype)

        if n_full > 0:
            def loop_body(i, carry):
                apply_chunk(pl.multiple_of(i * chunk, chunk), chunk)
                return carry
            jax.lax.fori_loop(0, n_full, loop_body, 0)
        if rem > 0:
            apply_chunk(n_full * chunk, rem)

    if num_groups > 1:
        def kernel(x_ref, gamma_ref, beta_ref, combine_ref, o_ref):
            body(x_ref, gamma_ref, beta_ref, o_ref, combine_ref)
    else:
        def kernel(x_ref, gamma_ref, beta_ref, o_ref):
            body(x_ref, gamma_ref, beta_ref, o_ref, None)
    return kernel


def _make_reduce_kernel(P, hw_tile, t_per_half, needs_mask):
    """Two-pass, pass 1: per-(batch, half, lane) sum-of-squares accumulator."""
    def kernel(x_ref, o_ref):
        t = pl.program_id(2)

        @pl.when(t == 0)
        def _():
            o_ref[...] = jnp.zeros_like(o_ref)

        xf = x_ref[...].astype(jnp.float32)                     # (hw_tile, L)
        if needs_mask:
            h = pl.program_id(1)
            base = (h * t_per_half + t) * hw_tile
            rows = jax.lax.broadcasted_iota(jnp.int32, xf.shape, 0) + base
            xf = jnp.where(rows < P, xf, 0.0)                   # zero rows past P (ragged tile)
        o_ref[...] += jnp.sum(xf * xf, axis=0, keepdims=True)
    return kernel


def _apply_kernel(x_ref, coeff_ref, beta_ref, o_ref):
    """Two-pass, pass 2: out = x * coeff + beta (f32 math, cast on store)."""
    xf = x_ref[...].astype(jnp.float32)                         # (hw_tile, L)
    o_ref[...] = (xf * coeff_ref[...] + beta_ref[...]).astype(o_ref.dtype)


# ----------------------------------------------------------------------------- wrappers

def _pick_repack(HW, C):
    """G = 128 // gcd(C, 128) so the presented lane dim L = G*C is a multiple of 128
    (lane-dense loads/stores) whenever HW % G == 0; otherwise 1."""
    if C % 128 == 0:
        return 1
    G = 128 // math.gcd(C, 128)
    L = G * C
    if G > 1 and HW % G == 0 and L * L * 4 <= (4 << 20):
        return G
    return 1


def _vmem_capacity_bytes():
    try:
        return int(pltpu.get_tpu_info().vmem_capacity_bytes)
    except Exception:
        return 64 << 20           # conservative default (v7x per-TensorCore VMEM)


def _grn_single_pass(x3, gamma_row, beta_row, combine, num_groups, vmem_limit):
    N, P, L = x3.shape
    kernel = _make_fused_kernel(num_groups, P, L, _CHUNK_ROWS)
    in_specs = [
        pl.BlockSpec((None, P, L), lambda n: (n, 0, 0)),   # x, batch dim squeezed
        pl.BlockSpec((1, L), lambda n: (0, 0)),            # gamma (lane-tiled, f32)
        pl.BlockSpec((1, L), lambda n: (0, 0)),            # beta  (lane-tiled, f32)
    ]
    args = [x3, gamma_row, beta_row]
    if num_groups > 1:
        in_specs.append(pl.BlockSpec((L, L), lambda n: (0, 0)))   # group-combine matrix
        args.append(combine)
    return pl.pallas_call(
        kernel,
        out_shape=jax.ShapeDtypeStruct((N, P, L), x3.dtype),
        grid=(N,),
        in_specs=in_specs,
        out_specs=pl.BlockSpec((None, P, L), lambda n: (n, 0, 0)),
        input_output_aliases={0: 0},
        compiler_params=pltpu.CompilerParams(
            dimension_semantics=("parallel",),
            vmem_limit_bytes=vmem_limit),
    )(*args)


def _finalize_coeff(partial, gamma_c, num_groups):
    """Tiny pure-JAX finalize: combine halves + groups, coeff = gamma*Nx + 1 (lane-tiled)."""
    N = partial.shape[0]
    L = partial.shape[-1]
    C = L // num_groups
    ss = partial.sum(axis=(1, 2))                               # (N, L) per-lane sums
    ss_c = ss.reshape(N, num_groups, C).sum(axis=1)             # (N, C) per-channel sums
    gx = jnp.sqrt(ss_c)
    nx = gx / (jnp.mean(gx, axis=-1, keepdims=True) + 1e-6)
    coeff_c = gamma_c * nx + 1.0                                # (N, C)
    return jnp.tile(coeff_c, (1, num_groups)).reshape(N, 1, L)  # lane-tiled (N, 1, L) f32


def _grn_two_pass(x3, gamma_c, beta_row, num_groups, hw_tile, vmem_limit):
    """HW-tiled two-pass GRN for images too large for the single-pass VMEM budget."""
    N, P, L = x3.shape
    n_t = -(-P // hw_tile)
    n_halves = 2 if (n_t >= 2 and n_t % 2 == 0) else 1          # split HW across v7x cores
    t_per_half = n_t // n_halves
    needs_mask = (n_t * hw_tile != P)                           # ragged last tile

    # Pass 1: raw per-(batch, half, lane) sum-of-squares (output-resident accumulator).
    partial = pl.pallas_call(
        _make_reduce_kernel(P, hw_tile, t_per_half, needs_mask),
        out_shape=jax.ShapeDtypeStruct((N, n_halves, 1, L), jnp.float32),
        grid=(N, n_halves, t_per_half),
        in_specs=[pl.BlockSpec((None, hw_tile, L),
                               lambda n, h, t: (n, h * t_per_half + t, 0))],
        out_specs=pl.BlockSpec((None, None, 1, L), lambda n, h, t: (n, h, 0, 0)),
        compiler_params=pltpu.CompilerParams(
            dimension_semantics=("parallel", "parallel", "arbitrary"),
            vmem_limit_bytes=vmem_limit),
    )(x3)

    coeff = _finalize_coeff(partial, gamma_c, num_groups)       # (N, 1, L) f32, tiny

    # Pass 2: streaming elementwise apply; fully parallel grid; x aliased to the output.
    out = pl.pallas_call(
        _apply_kernel,
        out_shape=jax.ShapeDtypeStruct((N, P, L), x3.dtype),
        grid=(N, n_t),
        in_specs=[pl.BlockSpec((None, hw_tile, L), lambda n, t: (n, t, 0)),
                  pl.BlockSpec((None, 1, L), lambda n, t: (n, 0, 0)),
                  pl.BlockSpec((1, L), lambda n, t: (0, 0))],
        out_specs=pl.BlockSpec((None, hw_tile, L), lambda n, t: (n, t, 0)),
        input_output_aliases={0: 0},
        compiler_params=pltpu.CompilerParams(
            dimension_semantics=("parallel", "parallel"),
            vmem_limit_bytes=vmem_limit),
    )(x3, coeff, beta_row)
    return out


def grn(x, gamma, beta):
    """GRN forward.  x: (N, H, W, C); gamma, beta: (1, 1, 1, C) as in the PyTorch module."""
    N, H, W, C = x.shape
    HW = H * W

    G = _pick_repack(HW, C)                   # lane-dense repack factor (1 if not applicable)
    L = G * C
    P = HW // G

    x3 = x.reshape(N, P, L)                   # contiguous row-major reshape (free)
    gamma_c = gamma.reshape(1, C).astype(jnp.float32)
    beta_c = beta.reshape(1, C).astype(jnp.float32)
    gamma_row = jnp.tile(gamma_c, (1, G))
    beta_row = jnp.tile(beta_c, (1, G))

    combine = None
    if G > 1:
        lane_ch = jnp.arange(L, dtype=jnp.int32) % C
        combine = (lane_ch[:, None] == lane_ch[None, :]).astype(jnp.float32)   # (L, L) 0/1

    itemsize = x.dtype.itemsize
    budget = (_vmem_capacity_bytes() * 3) // 4                  # leave compiler headroom
    vmem_limit = int(budget)                                    # hand full headroom to Mosaic

    chunk = min(P, _CHUNK_ROWS)
    combine_bytes = L * L * 4 if G > 1 else 0
    single_need = (4 * P * L * itemsize      # double-buffered in + out blocks
                   + combine_bytes
                   + 6 * chunk * L * 4       # f32 chunk temporaries
                   + (2 << 20))              # slack
    if single_need <= budget:
        # Single-pass: 1 HBM read + 1 write of x (roofline optimum).
        out3 = _grn_single_pass(x3, gamma_row, beta_row, combine, G, vmem_limit)
    else:
        # Two-pass fallback; tile size scales with the VMEM budget (bigger on v6e/v5e).
        tile_target = min(8 << 20, max(1 << 20, budget // 24))
        hw_tile = int(min(P, max(8, (tile_target // (L * itemsize)) // 8 * 8)))
        out3 = _grn_two_pass(x3, gamma_c, beta_row, G, hw_tile, vmem_limit)

    return out3.reshape(N, H, W, C)


def grn_ref(x, gamma, beta):
    """Pure-JAX reference mirroring the PyTorch forward exactly."""
    xf = x.astype(jnp.float32)
    gx = jnp.sqrt(jnp.sum(xf * xf, axis=(1, 2), keepdims=True))
    nx = gx / (jnp.mean(gx, axis=-1, keepdims=True) + 1e-6)
    return (gamma * (xf * nx) + beta + xf).astype(x.dtype)


# ----------------------------------------------------------------------------- test

if __name__ == "__main__":
    key = jax.random.PRNGKey(0)
    kx, kg, kb = jax.random.split(key, 3)

    # Test 1: C = 32 -> lane-dense repack (G = 4, L = 128), single-pass fused path.
    N, H, W, C = 2, 16, 16, 32
    x = jax.random.normal(kx, (N, H, W, C), dtype=jnp.float32)
    gamma = 0.1 * jax.random.normal(kg, (1, 1, 1, C), dtype=jnp.float32)
    beta = 0.1 * jax.random.normal(kb, (1, 1, 1, C), dtype=jnp.float32)
    ref = grn_ref(x, gamma, beta)
    out = jax.block_until_ready(grn(x, gamma, beta))
    assert jnp.allclose(out, ref, atol=1e-4, rtol=1e-4), "single-pass mismatch vs reference"

    # Test 2: C = 48 -> generalized repack (G = 8, L = 384, multi-vreg lanes).
    N2, H2, W2, C2 = 1, 4, 4, 48
    x2 = jax.random.normal(kx, (N2, H2, W2, C2), dtype=jnp.float32)
    g2 = 0.1 * jax.random.normal(kg, (1, 1, 1, C2), dtype=jnp.float32)
    b2 = 0.1 * jax.random.normal(kb, (1, 1, 1, C2), dtype=jnp.float32)
    out2 = jax.block_until_ready(grn(x2, g2, b2))
    assert jnp.allclose(out2, grn_ref(x2, g2, b2), atol=1e-4, rtol=1e-4), "C=48 mismatch"

    # Test 3: larger image exercising the chunked in-kernel reduce/apply loop (P > 512).
    N3, H3, W3, C3 = 1, 48, 48, 32
    x3_ = jax.random.normal(kx, (N3, H3, W3, C3), dtype=jnp.float32)
    g3 = 0.1 * jax.random.normal(kg, (1, 1, 1, C3), dtype=jnp.float32)
    b3 = 0.1 * jax.random.normal(kb, (1, 1, 1, C3), dtype=jnp.float32)
    out3 = jax.block_until_ready(grn(x3_, g3, b3))
    assert jnp.allclose(out3, grn_ref(x3_, g3, b3), atol=1e-4, rtol=1e-4), "chunked mismatch"

    # Tests 4/5: HW-tiled two-pass path (even tiling, and ragged tiling with row mask).
    G = _pick_repack(H * W, C)
    L, P = G * C, (H * W) // G
    x_flat = x.reshape(N, P, L)
    gamma_c = gamma.reshape(1, C).astype(jnp.float32)
    beta_row = jnp.tile(beta.reshape(1, C).astype(jnp.float32), (1, G))
    for hw_tile in (16, 24):   # 16 divides P=64; 24 exercises the ragged / masked path
        out_t = jax.block_until_ready(
            _grn_two_pass(x_flat, gamma_c, beta_row, G, hw_tile, vmem_limit=32 << 20)
        ).reshape(N, H, W, C)
        assert jnp.allclose(out_t, ref, atol=1e-4, rtol=1e-4), (
            f"two-pass mismatch vs reference (hw_tile={hw_tile})")

    print("KERNEL_OK")
</pallas_src>

<mosaic_0001>
module attributes {stable_mosaic.version = 11 : i64} {
  func.func @kernel(%arg0: i32, %arg1: memref<1x64x128xf32, #tpu.memory_space<vmem>>, %arg2: memref<1x128xf32, #tpu.memory_space<vmem>>, %arg3: memref<1x128xf32, #tpu.memory_space<vmem>>, %arg4: memref<128x128xf32, #tpu.memory_space<vmem>>, %arg5: memref<1x64x128xf32, #tpu.memory_space<vmem>>) attributes {dimension_semantics = [#tpu.dimension_semantics<parallel>], iteration_bounds = array<i64: 2>, scalar_prefetch = 0 : i64, scratch_operands = 0 : i64, tpu.core_type = #tpu.core_type<tc>, window_params = [{transform_indices = @transform_0, window_bounds = array<i64: 1, 64, 128>}, {pipeline_mode = #tpu.pipeline_mode<synchronous>, transform_indices = @transform_1, window_bounds = array<i64: 1, 128>}, {pipeline_mode = #tpu.pipeline_mode<synchronous>, transform_indices = @transform_2, window_bounds = array<i64: 1, 128>}, {pipeline_mode = #tpu.pipeline_mode<synchronous>, transform_indices = @transform_3, window_bounds = array<i64: 128, 128>}, {transform_indices = @transform_4, window_bounds = array<i64: 1, 64, 128>}]} {
    %cst = arith.constant 0.000000e+00 : f32
    %0 = vector.broadcast %cst : f32 to vector<1x128xf32>
    %c0 = arith.constant 0 : index
    %c0_0 = arith.constant 0 : index
    %c0_1 = arith.constant 0 : index
    %1 = vector.load %arg1[%c0, %c0_0, %c0_1] : memref<1x64x128xf32, #tpu.memory_space<vmem>>, vector<1x64x128xf32>
    %2 = vector.shape_cast %1 : vector<1x64x128xf32> to vector<64x128xf32>
    %3 = arith.mulf %2, %2 : vector<64x128xf32>
    %cst_2 = arith.constant dense<0.000000e+00> : vector<128xf32>
    %4 = vector.multi_reduction <add>, %3, %cst_2 [0] : vector<64x128xf32> to vector<128xf32>
    %5 = vector.shape_cast %4 : vector<128xf32> to vector<1x128xf32>
    %6 = arith.addf %0, %5 : vector<1x128xf32>
    %c0_3 = arith.constant 0 : index
    %c0_4 = arith.constant 0 : index
    %7 = vector.load %arg4[%c0_3, %c0_4] : memref<128x128xf32, #tpu.memory_space<vmem>>, vector<128x128xf32>
    %cst_5 = arith.constant dense<0.000000e+00> : vector<1x128xf32>
    %8 = tpu.matmul %6, %7, %cst_5 {dimension_numbers = #tpu.dot_dimension_numbers<[1], [0], [0], [1], [0, 0, 1, 1], [], []>} : vector<1x128xf32>, vector<128x128xf32>, vector<1x128xf32> -> vector<1x128xf32>
    %9 = math.sqrt %8 : vector<1x128xf32>
    %cst_6 = arith.constant dense<0.000000e+00> : vector<1xf32>
    %10 = vector.multi_reduction <add>, %9, %cst_6 [1] : vector<1x128xf32> to vector<1xf32>
    %11 = vector.shape_cast %10 : vector<1xf32> to vector<1x1xf32>
    %cst_7 = arith.constant 1.280000e+02 : f32
    %12 = vector.broadcast %cst_7 : f32 to vector<1x1xf32>
    %13 = arith.divf %11, %12 : vector<1x1xf32>
    %cst_8 = arith.constant 9.99999997E-7 : f32
    %14 = vector.broadcast %cst_8 : f32 to vector<1x1xf32>
    %15 = arith.addf %13, %14 : vector<1x1xf32>
    %16 = vector.broadcast %15 : vector<1x1xf32> to vector<1x128xf32>
    %17 = arith.divf %9, %16 : vector<1x128xf32>
    %c0_9 = arith.constant 0 : index
    %c0_10 = arith.constant 0 : index
    %18 = vector.load %arg2[%c0_9, %c0_10] : memref<1x128xf32, #tpu.memory_space<vmem>>, vector<1x128xf32>
    %19 = arith.mulf %18, %17 : vector<1x128xf32>
    %cst_11 = arith.constant 1.000000e+00 : f32
    %20 = vector.broadcast %cst_11 : f32 to vector<1x128xf32>
    %21 = arith.addf %19, %20 : vector<1x128xf32>
    %c0_12 = arith.constant 0 : index
    %c0_13 = arith.constant 0 : index
    %22 = vector.load %arg3[%c0_12, %c0_13] : memref<1x128xf32, #tpu.memory_space<vmem>>, vector<1x128xf32>
    %c0_14 = arith.constant 0 : index
    %c0_15 = arith.constant 0 : index
    %c0_16 = arith.constant 0 : index
    %23 = vector.load %arg1[%c0_14, %c0_15, %c0_16] : memref<1x64x128xf32, #tpu.memory_space<vmem>>, vector<1x64x128xf32>
    %24 = vector.shape_cast %23 : vector<1x64x128xf32> to vector<64x128xf32>
    %25 = vector.broadcast %21 : vector<1x128xf32> to vector<64x128xf32>
    %26 = arith.mulf %24, %25 : vector<64x128xf32>
    %27 = vector.broadcast %22 : vector<1x128xf32> to vector<64x128xf32>
    %28 = arith.addf %26, %27 : vector<64x128xf32>
    %c0_17 = arith.constant 0 : index
    %c0_18 = arith.constant 0 : index
    %c0_19 = arith.constant 0 : index
    %29 = vector.load %arg5[%c0_17, %c0_18, %c0_19] : memref<1x64x128xf32, #tpu.memory_space<vmem>>, vector<1x64x128xf32>
    %30 = vector.shape_cast %29 : vector<1x64x128xf32> to vector<64x128xf32>
    %31 = vector.shape_cast %28 : vector<64x128xf32> to vector<1x64x128xf32>
    tpu.vector_store %arg5[%c0_17, %c0_18, %c0_19], %31 {strides = array<i32>} : memref<1x64x128xf32, #tpu.memory_space<vmem>>, vector<1x64x128xf32>,
    return
  }
  func.func @transform_0(%arg0: i32) -> (i32, i32, i32) {
    %c0_i32 = arith.constant 0 : i32
    %c0_i32_0 = arith.constant 0 : i32
    %c0_i32_1 = arith.constant 0 : i32
    return %arg0, %c0_i32, %c0_i32_0 : i32, i32, i32
  }
  func.func @transform_1(%arg0: i32) -> (i32, i32) {
    %c0_i32 = arith.constant 0 : i32
    %c0_i32_0 = arith.constant 0 : i32
    %c0_i32_1 = arith.constant 0 : i32
    return %c0_i32, %c0_i32_0 : i32, i32
  }
  func.func @transform_2(%arg0: i32) -> (i32, i32) {
    %c0_i32 = arith.constant 0 : i32
    %c0_i32_0 = arith.constant 0 : i32
    %c0_i32_1 = arith.constant 0 : i32
    return %c0_i32, %c0_i32_0 : i32, i32
  }
  func.func @transform_3(%arg0: i32) -> (i32, i32) {
    %c0_i32 = arith.constant 0 : i32
    %c0_i32_0 = arith.constant 0 : i32
    %c0_i32_1 = arith.constant 0 : i32
    return %c0_i32, %c0_i32_0 : i32, i32
  }
  func.func @transform_4(%arg0: i32) -> (i32, i32, i32) {
    %c0_i32 = arith.constant 0 : i32
    %c0_i32_0 = arith.constant 0 : i32
    %c0_i32_1 = arith.constant 0 : i32
    return %arg0, %c0_i32, %c0_i32_0 : i32, i32, i32
  }
}

</mosaic_0001>

<llo_original>
// kernel: tpu_custom_call.1
$region0: #{tpu_custom_call.1}
  #allocation0 [shape = 'u32[]', space=smem, size = 0x4, offset = 0x4, fixed_abs, tag = 'smem constant byte address 0x4 - core index']
  #allocation1 [shape = 'u32[72,128]{1,0:T(1,128)}', space=vmem, size = 0x9000, scoped, tag = 'internal scratch']
  %s0 = inlined_call_operand.hbm [shape: f32[2,64,128], index: 0, kind: input, shape index: {}, may-alias: {0,4}]
  %s1 = inlined_call_operand.vmem [shape: f32[1,128], index: 1, kind: input, shape index: {}]
  %s2 = inlined_call_operand.vmem [shape: f32[1,128], index: 2, kind: input, shape index: {}]
  %s3 = inlined_call_operand.vmem [shape: f32[128,128], index: 3, kind: input, shape index: {}]
  %s4 = inlined_call_operand.hbm [shape: f32[2,64,128], index: 4, kind: output, shape index: {}, may-alias: {0,4}]
  %s5 = sld [smem:[#allocation0]]
  $region53: #{tpu_custom_call.1} parent=0
    _
  %s7 = ssub.s32 1, %s5
  %s8 = scalar_select 0, %s7, %s5
  $region1: #{tpu_custom_call.1} parent=0
    #allocation2 [shape = 'u8[65536]{0}', space=vmem, size = 0x10000, scoped, tag = 'input window, operand 0']
    #allocation3 [shape = 's32[2]{0}', space=sflag, size = 0x8, scoped, tag = 'scoped memory for tpu_custom_call.1']
    #allocation4 [shape = 's32[2]{0}', space=sflag, size = 0x8, scoped, tag = 'scoped memory for tpu_custom_call.1']
    #allocation5 [shape = 'u8[65536]{0}', space=vmem, size = 0x10000, scoped, tag = 'output window, operand 0']
    %9 = vsyncpa [#allocation3], 0
    %s10 = scalar_lea.sflag [#allocation3], 1
    %11 = vsyncpa %s10, 0
    %12 = vsyncpa [#allocation4], 0
    %s13 = scalar_lea.sflag [#allocation4], 1
    %14 = vsyncpa %s13, 0
    loop: start=0, step=1, limit=4
    $region2: #{tpu_custom_call.1} parent=1 // loop_pre_header
      _
    $region3: #{tpu_custom_call.1} parent=1 // loop_header
      %s16 = sphi 0, %s20
      %p17 = scmp.ge.s32.totalorder %s16, 4
      %s26 = sphi 0, %s28
      %s29 = sphi 0, %s26
      %s30 = sphi 0, %s29
      %s46 = sphi 0, %s30
      %s50 = sphi 0, %s50
      %s52 = sphi 0, %s50
      %s53 = sphi 0, %s52
      %s67 = sphi 0, %s53
      %s71 = sphi 0, %s71
      %s73 = sphi 0, %s71
      %s74 = sphi 0, %s73
      %s88 = sphi 0, %s74
      %s92 = sphi 0, %s92
      %s94 = sphi 0, %s92
      %s95 = sphi 0, %s94
      %s109 = sphi 0, %s95
      %s115 = sphi 0, %s117
      %s118 = sphi 0, %s115
      %s119 = sphi 0, %s118
      %s135 = sphi 0, %s119
    $region4: #{tpu_custom_call.1} parent=1 // loop_header_branch
      %19 = sbr.rel (%p17) target = $region8
    $region5: #{tpu_custom_call.1} parent=1 // loop_body
      %s21 = ssub.s32 %s16, 1
      %s22 = ssub.s32 %s16, 2
      %s23 = sadd.s32 %s16, 1
      %s24 = ssub.s32 %s16, %s23
      %p25 = scmp.eq.s32.totalorder %s24, 0
      %s27 = sadd.s32 %s26, 1
      %s28 = scalar_select %p25, %s26, %s27
      %p31 = pneg %p25
      %p32 = scmp.eq.s32.totalorder %s16, 1
      %p33 = por %p31, %p32
      %p34 = scmp.ne.s32.totalorder %s26, %s29
      %p35 = scmp.eq.s32.totalorder %s16, 0
      %p36 = por %p34, %p35
      %p37 = scmp.ne.s32.totalorder %s26, %s29
      %p38 = scmp.eq.s32.totalorder %s21, 1
      %p39 = por %p37, %p38
      %p40 = scmp.ne.s32.totalorder %s29, %s30
      %p41 = scmp.eq.s32.totalorder %s21, 0
      %p42 = por %p40, %p41
      %p43 = scmp.ne.s32.totalorder %s29, %s30
      %p44 = scmp.eq.s32.totalorder %s22, 1
      %p45 = por %p43, %p44
      %p47 = scmp.ne.s32.totalorder %s30, %s46
      %p48 = scmp.eq.s32.totalorder %s22, 0
      %p49 = por %p47, %p48
      %s51 = sadd.s32 %s50, 1
      %p54 = scmp.eq.s32.totalorder %s16, 1
      %p55 = scmp.ne.s32.totalorder %s50, %s52
      %p56 = scmp.eq.s32.totalorder %s16, 0
      %p57 = por %p55, %p56
      %p58 = scmp.ne.s32.totalorder %s50, %s52
      %p59 = scmp.eq.s32.totalorder %s21, 1
      %p60 = por %p58, %p59
      %p61 = scmp.ne.s32.totalorder %s52, %s53
      %p62 = scmp.eq.s32.totalorder %s21, 0
      %p63 = por %p61, %p62
      %p64 = scmp.ne.s32.totalorder %s52, %s53
      %p65 = scmp.eq.s32.totalorder %s22, 1
      %p66 = por %p64, %p65
      %p68 = scmp.ne.s32.totalorder %s53, %s67
      %p69 = scmp.eq.s32.totalorder %s22, 0
      %p70 = por %p68, %p69
      %s72 = sadd.s32 %s71, 1
      %p75 = scmp.eq.s32.totalorder %s16, 1
      %p76 = scmp.ne.s32.totalorder %s71, %s73
      %p77 = scmp.eq.s32.totalorder %s16, 0
      %p78 = por %p76, %p77
      %p79 = scmp.ne.s32.totalorder %s71, %s73
      %p80 = scmp.eq.s32.totalorder %s21, 1
      %p81 = por %p79, %p80
      %p82 = scmp.ne.s32.totalorder %s73, %s74
      %p83 = scmp.eq.s32.totalorder %s21, 0
      %p84 = por %p82, %p83
      %p85 = scmp.ne.s32.totalorder %s73, %s74
      %p86 = scmp.eq.s32.totalorder %s22, 1
      %p87 = por %p85, %p86
      %p89 = scmp.ne.s32.totalorder %s74, %s88
      %p90 = scmp.eq.s32.totalorder %s22, 0
      %p91 = por %p89, %p90
      %s93 = sadd.s32 %s92, 1
      %p96 = scmp.eq.s32.totalorder %s16, 1
      %p97 = scmp.ne.s32.totalorder %s92, %s94
      %p98 = scmp.eq.s32.totalorder %s16, 0
      %p99 = por %p97, %p98
      %p100 = scmp.ne.s32.totalorder %s92, %s94
      %p101 = scmp.eq.s32.totalorder %s21, 1
      %p102 = por %p100, %p101
      %p103 = scmp.ne.s32.totalorder %s94, %s95
      %p104 = scmp.eq.s32.totalorder %s21, 0
      %p105 = por %p103, %p104
      %p106 = scmp.ne.s32.totalorder %s94, %s95
      %p107 = scmp.eq.s32.totalorder %s22, 1
      %p108 = por %p106, %p107
      %p110 = scmp.ne.s32.totalorder %s95, %s109
      %p111 = scmp.eq.s32.totalorder %s22, 0
      %p112 = por %p110, %p111
      %s113 = ssub.s32 %s16, %s23
      %p114 = scmp.eq.s32.totalorder %s113, 0
      %s116 = sadd.s32 %s115, 1
      %s117 = scalar_select %p114, %s115, %s116
      %p120 = pneg %p114
      %p121 = scmp.eq.s32.totalorder %s16, 1
      %p122 = por %p120, %p121
      %p123 = scmp.ne.s32.totalorder %s115, %s118
      %p124 = scmp.eq.s32.totalorder %s16, 0
      %p125 = por %p123, %p124
      %p126 = scmp.ne.s32.totalorder %s115, %s118
      %p127 = scmp.eq.s32.totalorder %s21, 1
      %p128 = por %p126, %p127
      %p129 = scmp.ne.s32.totalorder %s118, %s119
      %p130 = scmp.eq.s32.totalorder %s21, 0
      %p131 = por %p129, %p130
      %p132 = scmp.ne.s32.totalorder %s118, %s119
      %p133 = scmp.eq.s32.totalorder %s22, 1
      %p134 = por %p132, %p133
      %p136 = scmp.ne.s32.totalorder %s119, %s135
      %p137 = scmp.eq.s32.totalorder %s22, 0
      %p138 = por %p136, %p137
      %p139 = scmp.le.s32.totalorder 1, %s16
      %p140 = scmp.lt.s32.totalorder %s16, 3
      %p141 = pnand %p139, %p140
      %p142 = pneg %p141
      // Predicated region
      $region9: #{tpu_custom_call.1} parent=5 // pred_check
        _
      $region10: #{tpu_custom_call.1} parent=5 // pred_check_branch
        %144 = sbr.rel (%p141) target = $region12
      $region11: #{tpu_custom_call.1} parent=5 // pred_region
        %s145 = ssub.s32 %s16, 1
        // Predicated region
        $region13: #{tpu_custom_call.1} parent=11 // pred_check
          %p146 = pneg %p63
        $region14: #{tpu_custom_call.1} parent=11 // pred_check_branch
          %148 = sbr.rel (%p146) target = $region16
        $region15: #{tpu_custom_call.1} parent=11 // pred_region
          _
        $region16: #{tpu_custom_call.1} parent=11 // pred_fallthru
          _
        // Predicated region
        $region17: #{tpu_custom_call.1} parent=11 // pred_check
          %p149 = pneg %p84
        $region18: #{tpu_custom_call.1} parent=11 // pred_check_branch
          %151 = sbr.rel (%p149) target = $region20
        $region19: #{tpu_custom_call.1} parent=11 // pred_region
          _
        $region20: #{tpu_custom_call.1} parent=11 // pred_fallthru
          _
        // Predicated region
        $region21: #{tpu_custom_call.1} parent=11 // pred_check
          %p152 = pneg %p105
        $region22: #{tpu_custom_call.1} parent=11 // pred_check_branch
          %154 = sbr.rel (%p152) target = $region24
        $region23: #{tpu_custom_call.1} parent=11 // pred_region
          _
        $region24: #{tpu_custom_call.1} parent=11 // pred_fallthru
          _
      $region12: #{tpu_custom_call.1} parent=5 // pred_fallthru
        _
      %p155 = scmp.lt.s32.totalorder %s16, 2
      // Predicated region
      $region25: #{tpu_custom_call.1} parent=5 // pred_check
        %p156 = pneg %p155
      $region26: #{tpu_custom_call.1} parent=5 // pred_check_branch
        %158 = sbr.rel (%p156) target = $region28
      $region27: #{tpu_custom_call.1} parent=5 // pred_region
        // Predicated region
        $region29: #{tpu_custom_call.1} parent=27 // pred_check
          %p159 = pneg %p36
        $region30: #{tpu_custom_call.1} parent=27 // pred_check_branch
          %161 = sbr.rel (%p159) target = $region32
        $region31: #{tpu_custom_call.1} parent=27 // pred_region
          %s162 = sand.u32 %s26, 1
          %s163 = scalar_lea.sflag [#allocation3], %s162
          %s164 = sand.u32 %s26, 1
          %s165 = smul.addr %s164, 64
          %s166 = scalar_lea.vmem [#allocation2], %s165
          %168 = vsyncadd %s163, 0
          %s169 = smul.addr %s16, 8
          %s170 = smul.addr %s169, 8
          %s171 = scalar_lea.hbm %s0, %s170
          %s172 = sshll.u32 %s171, 4
          %s173 = int_to_ptr.hbm [resolvable:$true] %s172
          %s174 = sshll.u32 %s166, 4
          %s175 = int_to_ptr.vmem [resolvable:$true] %s174
          %180 = dma.hbm_to_vmem [thread:$0]  %s173, 1024, %s175, %s163, 128, 128, 8
        $region32: #{tpu_custom_call.1} parent=27 // pred_fallthru
          _
      $region28: #{tpu_custom_call.1} parent=5 // pred_fallthru
        _
      %p181 = scmp.le.s32.totalorder 1, %s16
      %p182 = scmp.lt.s32.totalorder %s16, 3
      %p183 = pnand %p181, %p182
      %p184 = pneg %p183
      // Predicated region
      $region33: #{tpu_custom_call.1} parent=5 // pred_check
        _
      $region34: #{tpu_custom_call.1} parent=5 // pred_check_branch
        %186 = sbr.rel (%p183) target = $region36
      $region35: #{tpu_custom_call.1} parent=5 // pred_region
        %s187 = ssub.s32 %s16, 1
        %s188 = sand.u32 %s29, 1
        %s189 = scalar_lea.sflag [#allocation3], %s188
        %s190 = sand.u32 %s29, 1
        %s191 = smul.addr %s190, 64
        %s192 = scalar_lea.vmem [#allocation2], %s191
        // Predicated region
        $region37: #{tpu_custom_call.1} parent=35 // pred_check
          %p193 = pneg %p42
        $region38: #{tpu_custom_call.1} parent=35 // pred_check_branch
          %195 = sbr.rel (%p193) target = $region40
        $region39: #{tpu_custom_call.1} parent=35 // pred_region
          %197 = dma.done %s189, 1024
        $region40: #{tpu_custom_call.1} parent=35 // pred_fallthru
          _
        %s198 = sand.u32 %s29, 1
        %s199 = scalar_lea.sflag [#allocation3], %s198
        %s200 = sand.u32 %s29, 1
        %s201 = smul.addr %s200, 64
        %s202 = scalar_lea.vmem [#allocation2], %s201
        %p203 = pneg %p42
        %p204 = pneg %p39
        %p205 = pneg %p63
        %p206 = pneg %p60
        %p207 = pneg %p84
        %p208 = pneg %p81
        %p209 = pneg %p105
        %p210 = pneg %p102
        %p211 = pneg %p131
        %p212 = pneg %p128
        %s213 = sand.u32 %s118, 1
        %s214 = scalar_lea.sflag [#allocation4], %s213
        %s215 = sand.u32 %s118, 1
        %s216 = smul.addr %s215, 64
        %s217 = scalar_lea.vmem [#allocation5], %s216
        %v218 = vld [vmem:[%s192] sm:$0xff]
        %v219 = vld [vmem:[%s192 + $0x8] sm:$0xff]
        %v220 = vld [vmem:[%s192 + $0x10] sm:$0xff]
        %v221 = vld [vmem:[%s192 + $0x18] sm:$0xff]
        %v222 = vld [vmem:[%s192 + $0x20] sm:$0xff]
        %v223 = vld [vmem:[%s192 + $0x28] sm:$0xff]
        %v224 = vld [vmem:[%s192 + $0x30] sm:$0xff]
        %v225 = vld [vmem:[%s192 + $0x38] sm:$0xff]
        %v226 = vmul.f32 %v218, %v218
        %v227 = vmul.f32 %v219, %v219
        %v228 = vmul.f32 %v220, %v220
        %v229 = vmul.f32 %v221, %v221
        %v230 = vmul.f32 %v222, %v222
        %v231 = vmul.f32 %v223, %v223
        %v232 = vmul.f32 %v224, %v224
        %v233 = vmul.f32 %v225, %v225
        %v234 = vadd.f32 %v226, %v227
        %v235 = vadd.f32 %v234, %v228
        %v236 = vadd.f32 %v235, %v229
        %v237 = vadd.f32 %v236, %v230
        %v238 = vadd.f32 %v237, %v231
        %v239 = vadd.f32 %v238, %v232
        %v240 = vadd.f32 %v239, %v233
        %v241 = vrot.slane %v240, 4
        %v242 = vadd.f32 %v240, %v241
        %v243 = vrot.slane %v242, 2
        %v244 = vadd.f32 %v242, %v243
        %v245 = vrot.slane %v244, 1
        %v246 = vadd.f32 %v244, %v245
        %v247 = vadd.f32 %v246, 0.0
        %v248 = vld [vmem:[%s3] sm:$0xff]
        %v249 = vld [vmem:[%s3 + $0x8] sm:$0xff]
        %v250 = vld [vmem:[%s3 + $0x10] sm:$0xff]
        %v251 = vld [vmem:[%s3 + $0x18] sm:$0xff]
        %v252 = vld [vmem:[%s3 + $0x20] sm:$0xff]
        %v253 = vld [vmem:[%s3 + $0x28] sm:$0xff]
        %v254 = vld [vmem:[%s3 + $0x30] sm:$0xff]
        %v255 = vld [vmem:[%s3 + $0x38] sm:$0xff]
        %v256 = vld [vmem:[%s3 + $0x40] sm:$0xff]
        %v257 = vld [vmem:[%s3 + $0x48] sm:$0xff]
        %v258 = vld [vmem:[%s3 + $0x50] sm:$0xff]
        %v259 = vld [vmem:[%s3 + $0x58] sm:$0xff]
        %v260 = vld [vmem:[%s3 + $0x60] sm:$0xff]
        %v261 = vld [vmem:[%s3 + $0x68] sm:$0xff]
        %v262 = vld [vmem:[%s3 + $0x70] sm:$0xff]
        %v263 = vld [vmem:[%s3 + $0x78] sm:$0xff]
        %264 = vmatpush.msra.mxu0 %v263
        %265 = vmatpush.msra.mxu0 %v262
        %266 = vmatpush.msra.mxu0 %v261
        %267 = vmatpush.msra.mxu0 %v260
        %268 = vmatpush.msra.mxu0 %v259
        %269 = vmatpush.msra.mxu0 %v258
        %270 = vmatpush.msra.mxu0 %v257
        %271 = vmatpush.msra.mxu0 %v256
        %272 = vmatpush.msra.mxu0 %v255
        %273 = vmatpush.msra.mxu0 %v254
        %274 = vmatpush.msra.mxu0 %v253
        %275 = vmatpush.msra.mxu0 %v252
        %276 = vmatpush.msra.mxu0 %v251
        %277 = vmatpush.msra.mxu0 %v250
        %278 = vmatpush.msra.mxu0 %v249
        %279 = vmatpush.msra.mxu0 %v248
        %280 = vmatmul.f32.gmra.mxu0 %v247
        %v281 = vpop.f32.mrf.mxu0
        %v282 = vadd.f32 0.0, %v281
        %283 = vdwg.mxu0
        %v284 = vrsqrt.pop %v282
        %v285 = vmul.f32 %v284, %v282
        %v286 = vmul.f32 %v285, %v284
        %v287 = vmul.f32 0.5, %v286
        %v288 = vsub.f32 1.5, %v287
        %v289 = vmul.f32 %v284, %v288
        %v290 = vmul.f32 %v282, %v289
        %vm291 = vcmp.eq.f32.partialorder %v282, inf
        %v292 = vsel %vm291, %v282, %v290
        %vm293 = vcmp.eq.f32.partialorder %v282, 0.0
        %v294 = vand.u32 %v282, 2147483648
        %v295 = vsel %vm293, %v294, %v292
        %vm296 = vcmask 1040384
        %v297 = vsel %vm296, %v295, 0.0
        %298 = vadd.xlane.f32.xlu0 %v297
        %v299 = vpop.xlane.xlu0 %298
        %v300 = vrcp.pop 128.0
        %v301 = vmul.f32 128.0, %v300
        %v302 = vsub.f32 1.0, %v301
        %v303 = vmul.f32 %v300, %v302
        %v304 = vadd.f32 %v300, %v303
        %vm305 = vweird.f32 %v300
        %v306 = vsel %vm305, %v300, %v304
        %v307 = vmul.f32 %v299, %v306
        %v308 = vadd.f32 %v307, 1e-06
        %v309 = vrcp.pop %v308
        %v310 = vmul.f32 %v308, %v309
        %v311 = vsub.f32 1.0, %v310
        %v312 = vmul.f32 %v309, %v311
        %v313 = vadd.f32 %v309, %v312
        %vm314 = vweird.f32 %v308
        %vm315 = vweird.f32 %v309
        %vm316 = vmor %vm314, %vm315
        %v317 = vsel %vm316, %v309, %v313
        %v318 = vand.u32 2147483647, %v308
        %vm319 = vcmp.eq.f32.partialorder %v318, 8.507059e+37
        %v320 = vand.u32 %v308, 2147483648
        %v321 = vor.u32 1.1754944e-38, %v320
        %v322 = vsel %vm319, %v321, %v317
        %v323 = vmul.f32 %v295, %v322
        %v324 = vld [vmem:[%s1] sm:$0x1]
        %v325 = vmul.f32 %v324, %v323
        %v326 = vadd.f32 %v325, 1.0
        %v327 = vld [vmem:[%s2] sm:$0x1]
        %v329 = vperm.slane %v326, 0
        %v331 = vmul.f32 %v218, %v329
        %v332 = vmul.f32 %v219, %v329
        %v333 = vmul.f32 %v220, %v329
        %v334 = vmul.f32 %v221, %v329
        %v335 = vmul.f32 %v222, %v329
        %v336 = vmul.f32 %v223, %v329
        %v337 = vmul.f32 %v224, %v329
        %v338 = vmul.f32 %v225, %v329
        %v340 = vperm.slane %v327, 0
        %v342 = vadd.f32 %v331, %v340
        %v343 = vadd.f32 %v332, %v340
        %v344 = vadd.f32 %v333, %v340
        %v345 = vadd.f32 %v334, %v340
        %v346 = vadd.f32 %v335, %v340
        %v347 = vadd.f32 %v336, %v340
        %v348 = vadd.f32 %v337, %v340
        %v349 = vadd.f32 %v338, %v340
        %350 = vst [vmem:[%s217] sm:$0xff] %v342
        %351 = vst [vmem:[%s217 + $0x8] sm:$0xff] %v343
        %352 = vst [vmem:[%s217 + $0x10] sm:$0xff] %v344
        %353 = vst [vmem:[%s217 + $0x18] sm:$0xff] %v345
        %354 = vst [vmem:[%s217 + $0x20] sm:$0xff] %v346
        %355 = vst [vmem:[%s217 + $0x28] sm:$0xff] %v347
        %356 = vst [vmem:[%s217 + $0x30] sm:$0xff] %v348
        %357 = vst [vmem:[%s217 + $0x38] sm:$0xff] %v349
        %s358 = sand.u32 %s118, 1
        %s359 = scalar_lea.sflag [#allocation4], %s358
        %s360 = sand.u32 %s118, 1
        %s361 = smul.addr %s360, 64
        %s362 = scalar_lea.vmem [#allocation5], %s361
        // Predicated region
        $region41: #{tpu_custom_call.1} parent=35 // pred_check
          %p363 = pneg %p128
        $region42: #{tpu_custom_call.1} parent=35 // pred_check_branch
          %365 = sbr.rel (%p363) target = $region44
        $region43: #{tpu_custom_call.1} parent=35 // pred_region
          %367 = vsyncadd %s359, 0
          %s368 = smul.addr %s21, 8
          %s369 = smul.addr %s368, 8
          %s370 = scalar_lea.hbm %s4, %s369
          %s371 = sshll.u32 %s362, 4
          %s372 = int_to_ptr.vmem [resolvable:$true] %s371
          %s373 = sshll.u32 %s370, 4
          %s374 = int_to_ptr.hbm [resolvable:$true] %s373
          %379 = dma.vmem_to_hbm [thread:$0]  %s372, 1024, %s374, %s359, 128, 128, 8
        $region44: #{tpu_custom_call.1} parent=35 // pred_fallthru
          _
      $region36: #{tpu_custom_call.1} parent=5 // pred_fallthru
        _
      %p380 = scmp.le.s32.totalorder 2, %s16
      // Predicated region
      $region45: #{tpu_custom_call.1} parent=5 // pred_check
        %p381 = pneg %p380
      $region46: #{tpu_custom_call.1} parent=5 // pred_check_branch
        %383 = sbr.rel (%p381) target = $region48
      $region47: #{tpu_custom_call.1} parent=5 // pred_region
        %s384 = ssub.s32 %s16, 2
        // Predicated region
        $region49: #{tpu_custom_call.1} parent=47 // pred_check
          %p385 = pneg %p134
        $region50: #{tpu_custom_call.1} parent=47 // pred_check_branch
          %387 = sbr.rel (%p385) target = $region52
        $region51: #{tpu_custom_call.1} parent=47 // pred_region
          %s388 = sand.u32 %s119, 1
          %s389 = scalar_lea.sflag [#allocation4], %s388
          %s390 = sand.u32 %s119, 1
          %s391 = smul.addr %s390, 64
          %s392 = scalar_lea.vmem [#allocation5], %s391
          %394 = dma.done %s389, 1024
        $region52: #{tpu_custom_call.1} parent=47 // pred_fallthru
          _
      $region48: #{tpu_custom_call.1} parent=5 // pred_fallthru
        _
    $region6: #{tpu_custom_call.1} parent=1 // loop_footer
      %s20 = sadd.s32 1, %s16
    $region7: #{tpu_custom_call.1} parent=1 // loop_footer_branch
      %15 = sbr.rel target = $region3
    $region8: #{tpu_custom_call.1} parent=1 // loop_exit
      _
    %395 = vsyncpa [#allocation3], 1
    %s396 = scalar_lea.sflag [#allocation3], 1
    %397 = vsyncpa %s396, 1
    %398 = vsyncpa [#allocation4], 1
    %s399 = scalar_lea.sflag [#allocation4], 1
    %400 = vsyncpa %s399, 1

</llo_original>
